<compile_context>
chip_gen: v6e
topology: v6e:2x2x1
jax: 0.10.0
libtpu: 0.0.40
codegen_flags: <defaults>
</compile_context>

<pallas_src>
import functools

import jax
import jax.numpy as jnp
from jax.experimental import pallas as pl
from jax.experimental.pallas import tpu as pltpu

_LANE = 128  # vreg lane width
_SUB = 8     # vreg sublane width


def _round_up(x, m):
    return ((x + m - 1) // m) * m


def _two_layer_kernel(x_ref, w1_ref, b1_ref, w2_ref, b2_ref, out_ref, h_ref,
                      *, mxu_dtype):
    # x_ref : (block_m, D_in_p)  streamed batch tile (f32 in HBM)
    # w1_ref: (D_in_p, H_p)      pre-transposed, VMEM-resident
    # b1_ref: (1, H_p)           f32
    # w2_ref: (H_p, block_n)     pre-transposed, tiled over D_out
    # b2_ref: (1, block_n)       f32
    # h_ref : (block_m, H_p)     VMEM scratch caching relu(x @ W1 + b1)
    j = pl.program_id(1)

    @pl.when(j == 0)
    def _():
        x = x_ref[...]
        if mxu_dtype is not None:
            # Only the streamed x tile is cast in-kernel; weights were
            # pre-cast once in the wrapper.
            x = x.astype(mxu_dtype)
        # Canonical contraction (no transpose) -> straight to the MXU with
        # f32 accumulation.
        h = jnp.dot(x, w1_ref[...], preferred_element_type=jnp.float32)
        # Bias + ReLU in f32 on the VPU, then a single fused cast into the
        # scratch dtype (only one copy of the hidden activation stays live).
        h = jnp.maximum(h + b1_ref[...], 0.0)
        h_ref[...] = h.astype(h_ref.dtype)

    y = jnp.dot(h_ref[...], w2_ref[...], preferred_element_type=jnp.float32)
    out_ref[...] = (y + b2_ref[...]).astype(out_ref.dtype)


def prepare_params(w1, b1, w2, b2, *, mxu_dtype=None, block_n=None):
    """One-time, out-of-hot-path parameter prep: pad + transpose + optional cast.

    w1: (H, D_in), b1: (H,), w2: (D_out, H), b2: (D_out,) -- PyTorch layout.
    """
    H, D_in = w1.shape
    D_out = w2.shape[0]

    D_in_p = _round_up(D_in, _LANE)
    H_p = _round_up(H, _LANE)
    D_out_p = _round_up(D_out, _LANE)

    # D_out tile width (lane multiple). Single tile for moderate sizes; stream
    # w2 in (H_p, block_n) tiles for very wide outputs.
    if block_n is None:
        block_n = D_out_p if D_out_p <= 2048 else 1024
    block_n = min(_round_up(block_n, _LANE), D_out_p)
    D_out_p = _round_up(D_out_p, block_n)

    w_dtype = jnp.float32 if mxu_dtype is None else mxu_dtype

    # Pad, transpose ONCE (amortized over all batch tiles / calls), then cast.
    w1t = jnp.pad(w1, ((0, H_p - H), (0, D_in_p - D_in))).T.astype(w_dtype)
    w2t = jnp.pad(w2, ((0, D_out_p - D_out), (0, H_p - H))).T.astype(w_dtype)
    b1_p = jnp.pad(b1, (0, H_p - H)).reshape(1, H_p).astype(jnp.float32)
    b2_p = jnp.pad(b2, (0, D_out_p - D_out)).reshape(1, D_out_p).astype(jnp.float32)

    dims = dict(D_in=D_in, H=H, D_out=D_out, D_in_p=D_in_p, H_p=H_p,
                D_out_p=D_out_p, block_n=block_n, mxu_dtype=mxu_dtype)
    return (w1t, b1_p, w2t, b2_p), dims


def two_layer_net_prepared(x, params, dims, *, block_m=None,
                           out_dtype=jnp.float32):
    """Forward pass with pre-prepared (padded/transposed/cast) parameters."""
    w1t, b1_p, w2t, b2_p = params
    N, D_in = x.shape
    assert D_in == dims["D_in"]
    D_in_p, H_p, D_out_p = dims["D_in_p"], dims["H_p"], dims["D_out_p"]
    block_n = dims["block_n"]
    mxu_dtype = dims["mxu_dtype"]

    if block_m is None:
        # Multiple of 8 (sublane); 512 amortizes the ~0.35us/grid-step overhead,
        # is a 256-multiple for the v6e/v7x MXUs, and stays inside v7x VMEM.
        block_m = min(_round_up(N, _SUB), 512)
    N_p = _round_up(N, block_m)

    # Pad x only when needed (lane-dense D_in, whole batch tiles).
    # TODO(synk): for very large N with a ragged tail, mask the last block
    # instead of padding (saves one extra HBM pass over x).
    if N_p != N or D_in_p != D_in:
        x_p = jnp.pad(x, ((0, N_p - N), (0, D_in_p - D_in)))
    else:
        x_p = x

    num_m = N_p // block_m
    num_n = D_out_p // block_n
    grid = (num_m, num_n)

    h_dtype = jnp.float32 if mxu_dtype is None else mxu_dtype
    wbytes = jnp.dtype(w1t.dtype).itemsize
    hbytes = jnp.dtype(h_dtype).itemsize
    obytes = jnp.dtype(out_dtype).itemsize

    # Conservative VMEM estimate (assume double-buffered weights in case the
    # single-buffer request is not honored); capped for v7x's 64 MiB VMEM.
    est_bytes = (
        2 * block_m * D_in_p * 4
        + 2 * block_m * block_n * obytes
        + 2 * (D_in_p * H_p + H_p * block_n) * wbytes
        + 2 * (H_p + block_n) * 4
        + block_m * H_p * hbytes
    )
    vmem_limit = min(max(int(est_bytes * 1.5), 32 << 20), 48 << 20)

    kernel = functools.partial(_two_layer_kernel, mxu_dtype=mxu_dtype)

    def call(resident_mode):
        def spec(shape, index_map, *, resident):
            if resident and resident_mode is not None:
                return pl.BlockSpec(shape, index_map, pipeline_mode=resident_mode)
            return pl.BlockSpec(shape, index_map)

        # w2 / b2 are only grid-invariant when D_out fits in a single tile;
        # otherwise keep default double-buffering so their DMA overlaps compute.
        w2_resident = num_n == 1
        return pl.pallas_call(
            kernel,
            out_shape=jax.ShapeDtypeStruct((N_p, D_out_p), out_dtype),
            grid=grid,
            in_specs=[
                # Batch-streamed input.
                pl.BlockSpec((block_m, D_in_p), lambda i, j: (i, 0)),
                # VMEM-resident (constant index map) parameters.
                spec((D_in_p, H_p), lambda i, j: (0, 0), resident=True),
                spec((1, H_p), lambda i, j: (0, 0), resident=True),
                spec((H_p, block_n), lambda i, j: (0, j), resident=w2_resident),
                spec((1, block_n), lambda i, j: (0, j), resident=w2_resident),
            ],
            out_specs=pl.BlockSpec((block_m, block_n), lambda i, j: (i, j)),
            scratch_shapes=[pltpu.VMEM((block_m, H_p), h_dtype)],
            compiler_params=pltpu.CompilerParams(
                # Batch axis parallel (v7x megacore split); D_out axis must be
                # "arbitrary" because the cached hidden activation is computed
                # at j == 0 and reused for j > 0.
                dimension_semantics=("parallel", "arbitrary"),
                vmem_limit_bytes=vmem_limit,
            ),
        )(x_p, w1t, b1_p, w2t, b2_p)

    try:
        # Single-buffer the grid-invariant weights/biases so they don't occupy
        # 2x VMEM (the main win under v7x's 64 MiB VMEM).
        out = call(pl.Buffered(buffer_count=1))
    except Exception:  # fallback for jax builds without pipeline_mode support
        out = call(None)

    return out[:N, : dims["D_out"]]


def two_layer_net(x, w1, b1, w2, b2, *, block_m=None, block_n=None,
                  mxu_dtype="auto", out_dtype=jnp.float32):
    """relu(x @ W1^T + b1) @ W2^T + b2 with PyTorch-layout parameters."""
    if isinstance(mxu_dtype, str) and mxu_dtype == "auto":
        # bf16 MXU inputs (with f32 accumulation) are the biggest FLOPs lever
        # on v6e/v7x; keep pure f32 for small shapes so tight checks hold.
        H, D_in = w1.shape
        D_out = w2.shape[0]
        mxu_dtype = jnp.bfloat16 if max(D_in, H, D_out) >= 1024 else None
    params, dims = prepare_params(w1, b1, w2, b2, mxu_dtype=mxu_dtype,
                                  block_n=block_n)
    return two_layer_net_prepared(x, params, dims, block_m=block_m,
                                  out_dtype=out_dtype)


if __name__ == "__main__":
    # Small shapes consistent with the module: x = randn(N, D_in).
    N, D_in, H, D_out = 8, 64, 32, 16

    key = jax.random.PRNGKey(0)
    kx, kw1, kb1, kw2, kb2 = jax.random.split(key, 5)

    x = jax.random.normal(kx, (N, D_in), dtype=jnp.float32)

    # Deterministic parameter init mimicking torch.nn.Linear default:
    # U(-1/sqrt(fan_in), 1/sqrt(fan_in))
    bound1 = 1.0 / jnp.sqrt(jnp.float32(D_in))
    w1 = jax.random.uniform(kw1, (H, D_in), jnp.float32, -bound1, bound1)
    b1 = jax.random.uniform(kb1, (H,), jnp.float32, -bound1, bound1)

    bound2 = 1.0 / jnp.sqrt(jnp.float32(H))
    w2 = jax.random.uniform(kw2, (D_out, H), jnp.float32, -bound2, bound2)
    b2 = jax.random.uniform(kb2, (D_out,), jnp.float32, -bound2, bound2)

    y = two_layer_net(x, w1, b1, w2, b2)
    y = jax.block_until_ready(y)

    # Reference check in plain JAX (same math as the PyTorch module).
    y_ref = jnp.maximum(x @ w1.T + b1, 0.0) @ w2.T + b2
    assert y.shape == (N, D_out)
    assert jnp.allclose(y, y_ref, atol=1e-5, rtol=1e-5)

    print("KERNEL_OK")
</pallas_src>

<mosaic_0001>
module attributes {stable_mosaic.version = 11 : i64} {
  func.func @_two_layer_kernel(%arg0: i32, %arg1: i32, %arg2: memref<8x128xf32, #tpu.memory_space<vmem>>, %arg3: memref<128x128xf32, #tpu.memory_space<vmem>>, %arg4: memref<1x128xf32, #tpu.memory_space<vmem>>, %arg5: memref<128x128xf32, #tpu.memory_space<vmem>>, %arg6: memref<1x128xf32, #tpu.memory_space<vmem>>, %arg7: memref<8x128xf32, #tpu.memory_space<vmem>>, %arg8: memref<8x128xf32, #tpu.memory_space<vmem>>) attributes {dimension_semantics = [#tpu.dimension_semantics<parallel>, #tpu.dimension_semantics<arbitrary>], iteration_bounds = array<i64: 1, 1>, scalar_prefetch = 0 : i64, scratch_operands = 1 : i64, tpu.core_type = #tpu.core_type<tc>, window_params = [{transform_indices = @transform_0, window_bounds = array<i64: 8, 128>}, {pipeline_mode = #tpu.pipeline_mode<synchronous>, transform_indices = @transform_1, window_bounds = array<i64: 128, 128>}, {pipeline_mode = #tpu.pipeline_mode<synchronous>, transform_indices = @transform_2, window_bounds = array<i64: 1, 128>}, {pipeline_mode = #tpu.pipeline_mode<synchronous>, transform_indices = @transform_3, window_bounds = array<i64: 128, 128>}, {pipeline_mode = #tpu.pipeline_mode<synchronous>, transform_indices = @transform_4, window_bounds = array<i64: 1, 128>}, {transform_indices = @transform_5, window_bounds = array<i64: 8, 128>}]} {
    %c0_i32 = arith.constant 0 : i32
    %0 = arith.cmpi eq, %arg1, %c0_i32 : i32
    %1 = arith.extui %0 : i1 to i32
    %c0_i32_0 = arith.constant 0 : i32
    %2 = arith.cmpi ne, %1, %c0_i32_0 : i32
    scf.if %2 {
      %c0_8 = arith.constant 0 : index
      %c0_9 = arith.constant 0 : index
      %10 = vector.load %arg2[%c0_8, %c0_9] : memref<8x128xf32, #tpu.memory_space<vmem>>, vector<8x128xf32>
      %c0_10 = arith.constant 0 : index
      %c0_11 = arith.constant 0 : index
      %11 = vector.load %arg3[%c0_10, %c0_11] : memref<128x128xf32, #tpu.memory_space<vmem>>, vector<128x128xf32>
      %cst_12 = arith.constant dense<0.000000e+00> : vector<8x128xf32>
      %12 = tpu.matmul %10, %11, %cst_12 {dimension_numbers = #tpu.dot_dimension_numbers<[1], [0], [0], [1], [0, 0, 1, 1], [], []>} : vector<8x128xf32>, vector<128x128xf32>, vector<8x128xf32> -> vector<8x128xf32>
      %c0_13 = arith.constant 0 : index
      %c0_14 = arith.constant 0 : index
      %13 = vector.load %arg4[%c0_13, %c0_14] : memref<1x128xf32, #tpu.memory_space<vmem>>, vector<1x128xf32>
      %14 = vector.broadcast %13 : vector<1x128xf32> to vector<8x128xf32>
      %15 = arith.addf %12, %14 : vector<8x128xf32>
      %cst_15 = arith.constant 0.000000e+00 : f32
      %16 = vector.broadcast %cst_15 : f32 to vector<8x128xf32>
      %17 = arith.maximumf %15, %16 : vector<8x128xf32>
      %c0_16 = arith.constant 0 : index
      %c0_17 = arith.constant 0 : index
      %18 = vector.load %arg8[%c0_16, %c0_17] : memref<8x128xf32, #tpu.memory_space<vmem>>, vector<8x128xf32>
      tpu.vector_store %arg8[%c0_16, %c0_17], %17 {strides = array<i32>} : memref<8x128xf32, #tpu.memory_space<vmem>>, vector<8x128xf32>,
    } else {
    }
    %c0 = arith.constant 0 : index
    %c0_1 = arith.constant 0 : index
    %3 = vector.load %arg8[%c0, %c0_1] : memref<8x128xf32, #tpu.memory_space<vmem>>, vector<8x128xf32>
    %c0_2 = arith.constant 0 : index
    %c0_3 = arith.constant 0 : index
    %4 = vector.load %arg5[%c0_2, %c0_3] : memref<128x128xf32, #tpu.memory_space<vmem>>, vector<128x128xf32>
    %cst = arith.constant dense<0.000000e+00> : vector<8x128xf32>
    %5 = tpu.matmul %3, %4, %cst {dimension_numbers = #tpu.dot_dimension_numbers<[1], [0], [0], [1], [0, 0, 1, 1], [], []>} : vector<8x128xf32>, vector<128x128xf32>, vector<8x128xf32> -> vector<8x128xf32>
    %c0_4 = arith.constant 0 : index
    %c0_5 = arith.constant 0 : index
    %6 = vector.load %arg6[%c0_4, %c0_5] : memref<1x128xf32, #tpu.memory_space<vmem>>, vector<1x128xf32>
    %7 = vector.broadcast %6 : vector<1x128xf32> to vector<8x128xf32>
    %8 = arith.addf %5, %7 : vector<8x128xf32>
    %c0_6 = arith.constant 0 : index
    %c0_7 = arith.constant 0 : index
    %9 = vector.load %arg7[%c0_6, %c0_7] : memref<8x128xf32, #tpu.memory_space<vmem>>, vector<8x128xf32>
    tpu.vector_store %arg7[%c0_6, %c0_7], %8 {strides = array<i32>} : memref<8x128xf32, #tpu.memory_space<vmem>>, vector<8x128xf32>,
    return
  }
  func.func @transform_0(%arg0: i32, %arg1: i32) -> (i32, i32) {
    %c0_i32 = arith.constant 0 : i32
    %c0_i32_0 = arith.constant 0 : i32
    return %arg0, %c0_i32 : i32, i32
  }
  func.func @transform_1(%arg0: i32, %arg1: i32) -> (i32, i32) {
    %c0_i32 = arith.constant 0 : i32
    %c0_i32_0 = arith.constant 0 : i32
    %c0_i32_1 = arith.constant 0 : i32
    return %c0_i32, %c0_i32_0 : i32, i32
  }
  func.func @transform_2(%arg0: i32, %arg1: i32) -> (i32, i32) {
    %c0_i32 = arith.constant 0 : i32
    %c0_i32_0 = arith.constant 0 : i32
    %c0_i32_1 = arith.constant 0 : i32
    return %c0_i32, %c0_i32_0 : i32, i32
  }
  func.func @transform_3(%arg0: i32, %arg1: i32) -> (i32, i32) {
    %c0_i32 = arith.constant 0 : i32
    %c0_i32_0 = arith.constant 0 : i32
    return %c0_i32, %arg1 : i32, i32
  }
  func.func @transform_4(%arg0: i32, %arg1: i32) -> (i32, i32) {
    %c0_i32 = arith.constant 0 : i32
    %c0_i32_0 = arith.constant 0 : i32
    return %c0_i32, %arg1 : i32, i32
  }
  func.func @transform_5(%arg0: i32, %arg1: i32) -> (i32, i32) {
    %c0_i32 = arith.constant 0 : i32
    return %arg0, %arg1 : i32, i32
  }
}

module attributes {stable_mosaic.version = 11 : i64} {
  func.func @_two_layer_kernel(%arg0: i32, %arg1: i32, %arg2: memref<8x128xf32, #tpu.memory_space<vmem>>, %arg3: memref<128x128xf32, #tpu.memory_space<vmem>>, %arg4: memref<1x128xf32, #tpu.memory_space<vmem>>, %arg5: memref<128x128xf32, #tpu.memory_space<vmem>>, %arg6: memref<1x128xf32, #tpu.memory_space<vmem>>, %arg7: memref<8x128xf32, #tpu.memory_space<vmem>>, %arg8: memref<8x128xf32, #tpu.memory_space<vmem>>) attributes {dimension_semantics = [#tpu.dimension_semantics<parallel>, #tpu.dimension_semantics<arbitrary>], iteration_bounds = array<i64: 1, 1>, scalar_prefetch = 0 : i64, scratch_operands = 1 : i64, tpu.core_type = #tpu.core_type<tc>, window_params = [{transform_indices = @transform_0, window_bounds = array<i64: 8, 128>}, {pipeline_mode = #tpu.pipeline_mode<synchronous>, transform_indices = @transform_1, window_bounds = array<i64: 128, 128>}, {pipeline_mode = #tpu.pipeline_mode<synchronous>, transform_indices = @transform_2, window_bounds = array<i64: 1, 128>}, {transform_indices = @transform_3, window_bounds = array<i64: 128, 128>}, {transform_indices = @transform_4, window_bounds = array<i64: 1, 128>}, {transform_indices = @transform_5, window_bounds = array<i64: 8, 128>}]} {
    %c0_i32 = arith.constant 0 : i32
    %0 = arith.cmpi eq, %arg1, %c0_i32 : i32
    %1 = arith.extui %0 : i1 to i32
    %c0_i32_0 = arith.constant 0 : i32
    %2 = arith.cmpi ne, %1, %c0_i32_0 : i32
    scf.if %2 {
      %c0_8 = arith.constant 0 : index
      %c0_9 = arith.constant 0 : index
      %10 = vector.load %arg2[%c0_8, %c0_9] : memref<8x128xf32, #tpu.memory_space<vmem>>, vector<8x128xf32>
      %c0_10 = arith.constant 0 : index
      %c0_11 = arith.constant 0 : index
      %11 = vector.load %arg3[%c0_10, %c0_11] : memref<128x128xf32, #tpu.memory_space<vmem>>, vector<128x128xf32>
      %cst_12 = arith.constant dense<0.000000e+00> : vector<8x128xf32>
      %12 = tpu.matmul %10, %11, %cst_12 {dimension_numbers = #tpu.dot_dimension_numbers<[1], [0], [0], [1], [0, 0, 1, 1], [], []>} : vector<8x128xf32>, vector<128x128xf32>, vector<8x128xf32> -> vector<8x128xf32>
      %c0_13 = arith.constant 0 : index
      %c0_14 = arith.constant 0 : index
      %13 = vector.load %arg4[%c0_13, %c0_14] : memref<1x128xf32, #tpu.memory_space<vmem>>, vector<1x128xf32>
      %14 = vector.broadcast %13 : vector<1x128xf32> to vector<8x128xf32>
      %15 = arith.addf %12, %14 : vector<8x128xf32>
      %cst_15 = arith.constant 0.000000e+00 : f32
      %16 = vector.broadcast %cst_15 : f32 to vector<8x128xf32>
      %17 = arith.maximumf %15, %16 : vector<8x128xf32>
      %c0_16 = arith.constant 0 : index
      %c0_17 = arith.constant 0 : index
      %18 = vector.load %arg8[%c0_16, %c0_17] : memref<8x128xf32, #tpu.memory_space<vmem>>, vector<8x128xf32>
      tpu.vector_store %arg8[%c0_16, %c0_17], %17 {strides = array<i32>} : memref<8x128xf32, #tpu.memory_space<vmem>>, vector<8x128xf32>,
    } else {
    }
    %c0 = arith.constant 0 : index
    %c0_1 = arith.constant 0 : index
    %3 = vector.load %arg8[%c0, %c0_1] : memref<8x128xf32, #tpu.memory_space<vmem>>, vector<8x128xf32>
    %c0_2 = arith.constant 0 : index
    %c0_3 = arith.constant 0 : index
    %4 = vector.load %arg5[%c0_2, %c0_3] : memref<128x128xf32, #tpu.memory_space<vmem>>, vector<128x128xf32>
    %cst = arith.constant dense<0.000000e+00> : vector<8x128xf32>
    %5 = tpu.matmul %3, %4, %cst {dimension_numbers = #tpu.dot_dimension_numbers<[1], [0], [0], [1], [0, 0, 1, 1], [], []>} : vector<8x128xf32>, vector<128x128xf32>, vector<8x128xf32> -> vector<8x128xf32>
    %c0_4 = arith.constant 0 : index
    %c0_5 = arith.constant 0 : index
    %6 = vector.load %arg6[%c0_4, %c0_5] : memref<1x128xf32, #tpu.memory_space<vmem>>, vector<1x128xf32>
    %7 = vector.broadcast %6 : vector<1x128xf32> to vector<8x128xf32>
    %8 = arith.addf %5, %7 : vector<8x128xf32>
    %c0_6 = arith.constant 0 : index
    %c0_7 = arith.constant 0 : index
    %9 = vector.load %arg7[%c0_6, %c0_7] : memref<8x128xf32, #tpu.memory_space<vmem>>, vector<8x128xf32>
    tpu.vector_store %arg7[%c0_6, %c0_7], %8 {strides = array<i32>} : memref<8x128xf32, #tpu.memory_space<vmem>>, vector<8x128xf32>,
    return
  }
  func.func @transform_0(%arg0: i32, %arg1: i32) -> (i32, i32) {
    %c0_i32 = arith.constant 0 : i32
    %c0_i32_0 = arith.constant 0 : i32
    return %arg0, %c0_i32 : i32, i32
  }
  func.func @transform_1(%arg0: i32, %arg1: i32) -> (i32, i32) {
    %c0_i32 = arith.constant 0 : i32
    %c0_i32_0 = arith.constant 0 : i32
    %c0_i32_1 = arith.constant 0 : i32
    return %c0_i32, %c0_i32_0 : i32, i32
  }
  func.func @transform_2(%arg0: i32, %arg1: i32) -> (i32, i32) {
    %c0_i32 = arith.constant 0 : i32
    %c0_i32_0 = arith.constant 0 : i32
    %c0_i32_1 = arith.constant 0 : i32
    return %c0_i32, %c0_i32_0 : i32, i32
  }
  func.func @transform_3(%arg0: i32, %arg1: i32) -> (i32, i32) {
    %c0_i32 = arith.constant 0 : i32
    %c0_i32_0 = arith.constant 0 : i32
    return %c0_i32, %arg1 : i32, i32
  }
  func.func @transform_4(%arg0: i32, %arg1: i32) -> (i32, i32) {
    %c0_i32 = arith.constant 0 : i32
    %c0_i32_0 = arith.constant 0 : i32
    return %c0_i32, %arg1 : i32, i32
  }
  func.func @transform_5(%arg0: i32, %arg1: i32) -> (i32, i32) {
    %c0_i32 = arith.constant 0 : i32
    return %arg0, %arg1 : i32, i32
  }
}

</mosaic_0001>

<llo_original>
// kernel: tpu_custom_call.1
$region0: #{tpu_custom_call.1}
  #allocation0 [shape = 'u32[]', space=smem, size = 0x4, offset = 0x4, fixed_abs, tag = 'smem constant byte address 0x4 - core index']
  #allocation1 [shape = 'u32[144,128]{1,0:T(1,128)}', space=vmem, size = 0x12000, scoped, tag = 'internal scratch']
  #allocation2 [shape = 'f32[8,128]{1,0:T(8,128)}', space=vmem, size = 0x1000, scoped, tag = 'scratch operand']
  %s0 = inlined_call_operand.hbm [shape: f32[8,128], index: 0, kind: input, shape index: {}]
  %s1 = inlined_call_operand.hbm [shape: f32[128,128], index: 1, kind: input, shape index: {}]
  %s2 = inlined_call_operand.vmem [shape: f32[1,128], index: 2, kind: input, shape index: {}]
  %s3 = inlined_call_operand.hbm [shape: f32[128,128], index: 3, kind: input, shape index: {}]
  %s4 = inlined_call_operand.vmem [shape: f32[1,128], index: 4, kind: input, shape index: {}]
  %s5 = inlined_call_operand.hbm [shape: f32[8,128], index: 5, kind: output, shape index: {}]
  %s6 = sld [smem:[#allocation0]]
  $region46: #{tpu_custom_call.1} parent=0
    _
  %s8 = ssub.s32 1, %s6
  %s9 = scalar_select 0, %s8, %s6
  $region1: #{tpu_custom_call.1} parent=0
    #allocation3 [shape = 'u8[4096]{0}', space=vmem, size = 0x1000, scoped, tag = 'input window, operand 0, single buffered']
    #allocation4 [shape = 's32[1]{0}', space=sflag, size = 0x4, scoped, tag = 'scoped memory for tpu_custom_call.1']
    #allocation5 [shape = 's32[1]{0}', space=sflag, size = 0x4, scoped, tag = 'scoped memory for tpu_custom_call.1']
    #allocation6 [shape = 'u8[65536]{0}', space=vmem, size = 0x10000, scoped, tag = 'input window, operand 1, single buffered']
    #allocation7 [shape = 's32[1]{0}', space=sflag, size = 0x4, scoped, tag = 'scoped memory for tpu_custom_call.1']
    #allocation8 [shape = 'u8[65536]{0}', space=vmem, size = 0x10000, scoped, tag = 'input window, operand 3, single buffered']
    #allocation9 [shape = 'u8[4096]{0}', space=vmem, size = 0x1000, scoped, tag = 'output window, operand 0, single buffered']
    %10 = vsyncpa [#allocation4], 0
    %11 = vsyncpa [#allocation7], 0
    %12 = vsyncpa [#allocation5], 0
    // Predicated region
    $region2: #{tpu_custom_call.1} parent=1 // pred_check
      _
    $region3: #{tpu_custom_call.1} parent=1 // pred_check_branch
      %14 = sbr.rel (0) target = $region5
    $region4: #{tpu_custom_call.1} parent=1 // pred_region
      %s16 = ssub.s32 128, 128
      %17 = vsyncadd [#allocation4], %s16
      %s19 = sshll.u32 [#allocation3], 4
      %s20 = int_to_ptr.vmem [resolvable:$true] %s19
      %22 = dma.hbm_to_vmem [thread:$0]  %s0, 128, %s20, [#allocation4]
    $region5: #{tpu_custom_call.1} parent=1 // pred_fallthru
      _
    // Predicated region
    $region6: #{tpu_custom_call.1} parent=1 // pred_check
      _
    $region7: #{tpu_custom_call.1} parent=1 // pred_check_branch
      %24 = sbr.rel (0) target = $region9
    $region8: #{tpu_custom_call.1} parent=1 // pred_region
      %s26 = ssub.s32 2048, 2048
      %27 = vsyncadd [#allocation7], %s26
      %s28 = sshll.u32 [#allocation6], 4
      %s29 = int_to_ptr.vmem [resolvable:$true] %s28
      %34 = dma.hbm_to_vmem [thread:$0]  %s1, 2048, %s29, [#allocation7], 128, 128, 8
    $region9: #{tpu_custom_call.1} parent=1 // pred_fallthru
      _
    // Predicated region
    $region10: #{tpu_custom_call.1} parent=1 // pred_check
      _
    $region11: #{tpu_custom_call.1} parent=1 // pred_check_branch
      %36 = sbr.rel (0) target = $region13
    $region12: #{tpu_custom_call.1} parent=1 // pred_region
      _
    $region13: #{tpu_custom_call.1} parent=1 // pred_fallthru
      _
    // Predicated region
    $region14: #{tpu_custom_call.1} parent=1 // pred_check
      _
    $region15: #{tpu_custom_call.1} parent=1 // pred_check_branch
      %38 = sbr.rel (0) target = $region17
    $region16: #{tpu_custom_call.1} parent=1 // pred_region
      %s40 = ssub.s32 2048, 2048
      %41 = vsyncadd [#allocation7], %s40
      %s42 = sshll.u32 [#allocation8], 4
      %s43 = int_to_ptr.vmem [resolvable:$true] %s42
      %48 = dma.hbm_to_vmem [thread:$0]  %s3, 2048, %s43, [#allocation7], 128, 128, 8
    $region17: #{tpu_custom_call.1} parent=1 // pred_fallthru
      _
    // Predicated region
    $region18: #{tpu_custom_call.1} parent=1 // pred_check
      _
    $region19: #{tpu_custom_call.1} parent=1 // pred_check_branch
      %50 = sbr.rel (0) target = $region21
    $region20: #{tpu_custom_call.1} parent=1 // pred_region
      _
    $region21: #{tpu_custom_call.1} parent=1 // pred_fallthru
      _
    // Predicated region
    $region22: #{tpu_custom_call.1} parent=1 // pred_check
      _
    $region23: #{tpu_custom_call.1} parent=1 // pred_check_branch
      %52 = sbr.rel (0) target = $region25
    $region24: #{tpu_custom_call.1} parent=1 // pred_region
      %53 = dma.done [#allocation4], 128
    $region25: #{tpu_custom_call.1} parent=1 // pred_fallthru
      _
    // Predicated region
    $region26: #{tpu_custom_call.1} parent=1 // pred_check
      _
    $region27: #{tpu_custom_call.1} parent=1 // pred_check_branch
      %55 = sbr.rel (0) target = $region29
    $region28: #{tpu_custom_call.1} parent=1 // pred_region
      %56 = dma.done [#allocation7], 2048
    $region29: #{tpu_custom_call.1} parent=1 // pred_fallthru
      _
    // Predicated region
    $region30: #{tpu_custom_call.1} parent=1 // pred_check
      _
    $region31: #{tpu_custom_call.1} parent=1 // pred_check_branch
      %58 = sbr.rel (0) target = $region33
    $region32: #{tpu_custom_call.1} parent=1 // pred_region
      %59 = dma.done [#allocation7], 2048
    $region33: #{tpu_custom_call.1} parent=1 // pred_fallthru
      _
    %p60 = scmp.eq.s32.totalorder 0, 0
    // Predicated region
    $region34: #{tpu_custom_call.1} parent=1 // pred_check
      %p61 = pneg %p60
    $region35: #{tpu_custom_call.1} parent=1 // pred_check_branch
      %63 = sbr.rel (%p61) target = $region37
    $region36: #{tpu_custom_call.1} parent=1 // pred_region
      %v64 = vld [vmem:[#allocation3] sm:$0xff]
      %v65 = vld [vmem:[#allocation6] sm:$0xff]
      %v66 = vld [vmem:[#allocation6 + $0x8] sm:$0xff]
      %v67 = vld [vmem:[#allocation6 + $0x10] sm:$0xff]
      %v68 = vld [vmem:[#allocation6 + $0x18] sm:$0xff]
      %v69 = vld [vmem:[#allocation6 + $0x20] sm:$0xff]
      %v70 = vld [vmem:[#allocation6 + $0x28] sm:$0xff]
      %v71 = vld [vmem:[#allocation6 + $0x30] sm:$0xff]
      %v72 = vld [vmem:[#allocation6 + $0x38] sm:$0xff]
      %v73 = vld [vmem:[#allocation6 + $0x40] sm:$0xff]
      %v74 = vld [vmem:[#allocation6 + $0x48] sm:$0xff]
      %v75 = vld [vmem:[#allocation6 + $0x50] sm:$0xff]
      %v76 = vld [vmem:[#allocation6 + $0x58] sm:$0xff]
      %v77 = vld [vmem:[#allocation6 + $0x60] sm:$0xff]
      %v78 = vld [vmem:[#allocation6 + $0x68] sm:$0xff]
      %v79 = vld [vmem:[#allocation6 + $0x70] sm:$0xff]
      %v80 = vld [vmem:[#allocation6 + $0x78] sm:$0xff]
      %v81 = vld [vmem:[%s2] sm:$0x1]
      %v83 = vlaneseq
      %v84 = vshrl.u32 %v83, 7
      %v85 = vsub.s32 0, %v84
      %v86 = vrot.slane %v81, %v85
      %88 = vmatprep.subr.mxu0 0.0
      %89 = vmatpush1.msra.mxu0 %v80
      %90 = vmatprep.subr.mxu0 0.0
      %91 = vmatpush1.msra.mxu0 %v79
      %92 = vmatprep.subr.mxu0 0.0
      %93 = vmatpush1.msra.mxu0 %v78
      %94 = vmatprep.subr.mxu0 0.0
      %95 = vmatpush1.msra.mxu0 %v77
      %96 = vmatprep.subr.mxu0 0.0
      %97 = vmatpush1.msra.mxu0 %v76
      %98 = vmatprep.subr.mxu0 0.0
      %99 = vmatpush1.msra.mxu0 %v75
      %100 = vmatprep.subr.mxu0 0.0
      %101 = vmatpush1.msra.mxu0 %v74
      %102 = vmatprep.subr.mxu0 0.0
      %103 = vmatpush1.msra.mxu0 %v73
      %104 = vmatprep.subr.mxu0 0.0
      %105 = vmatpush1.msra.mxu0 %v72
      %106 = vmatprep.subr.mxu0 0.0
      %107 = vmatpush1.msra.mxu0 %v71
      %108 = vmatprep.subr.mxu0 0.0
      %109 = vmatpush1.msra.mxu0 %v70
      %110 = vmatprep.subr.mxu0 0.0
      %111 = vmatpush1.msra.mxu0 %v69
      %112 = vmatprep.subr.mxu0 0.0
      %113 = vmatpush1.msra.mxu0 %v68
      %114 = vmatprep.subr.mxu0 0.0
      %115 = vmatpush1.msra.mxu0 %v67
      %116 = vmatprep.subr.mxu0 0.0
      %117 = vmatpush1.msra.mxu0 %v66
      %118 = vmatprep.subr.mxu0 0.0
      %119 = vmatpush1.msra.mxu0 %v65
      %120 = vmatprep.subr.mxu0 0.0
      %121 = vmatpush2.msra.mxu0 0.0
      %122 = vmatprep.subr.mxu0 0.0
      %123 = vmatpush2.msra.mxu0 0.0
      %124 = vmatprep.subr.mxu0 0.0
      %125 = vmatpush2.msra.mxu0 0.0
      %126 = vmatprep.subr.mxu0 0.0
      %127 = vmatpush2.msra.mxu0 0.0
      %128 = vmatprep.subr.mxu0 0.0
      %129 = vmatpush2.msra.mxu0 0.0
      %130 = vmatprep.subr.mxu0 0.0
      %131 = vmatpush2.msra.mxu0 0.0
      %132 = vmatprep.subr.mxu0 0.0
      %133 = vmatpush2.msra.mxu0 0.0
      %134 = vmatprep.subr.mxu0 0.0
      %135 = vmatpush2.msra.mxu0 0.0
      %136 = vmatprep.subr.mxu0 0.0
      %137 = vmatpush2.msra.mxu0 0.0
      %138 = vmatprep.subr.mxu0 0.0
      %139 = vmatpush2.msra.mxu0 0.0
      %140 = vmatprep.subr.mxu0 0.0
      %141 = vmatpush2.msra.mxu0 0.0
      %142 = vmatprep.subr.mxu0 0.0
      %143 = vmatpush2.msra.mxu0 0.0
      %144 = vmatprep.subr.mxu0 0.0
      %145 = vmatpush2.msra.mxu0 0.0
      %146 = vmatprep.subr.mxu0 0.0
      %147 = vmatpush2.msra.mxu0 0.0
      %148 = vmatprep.subr.mxu0 0.0
      %149 = vmatpush2.msra.mxu0 0.0
      %150 = vmatprep.subr.mxu0 0.0
      %151 = vmatpush2.msra.mxu0 0.0
      %152 = vmatprep.mubr.f32.mxu0 0.0
      %153 = vmatmul.mubr.f32.gmra.mxu0 %v64
      %v154 = vpop.f32.mrf.mxu0
      %v155 = vadd.f32 %v86, %v154
      %v156 = vpop.f32.mrf.mxu0
      %157 = vdwg.mxu0
      %v158 = vmax.f32 %v155, 0.0
      %159 = vst [vmem:[#allocation2] sm:$0xff] %v158
    $region37: #{tpu_custom_call.1} parent=1 // pred_fallthru
      _
    %v160 = vld [vmem:[#allocation2] sm:$0xff]
    %v161 = vld [vmem:[#allocation8] sm:$0xff]
    %v162 = vld [vmem:[#allocation8 + $0x8] sm:$0xff]
    %v163 = vld [vmem:[#allocation8 + $0x10] sm:$0xff]
    %v164 = vld [vmem:[#allocation8 + $0x18] sm:$0xff]
    %v165 = vld [vmem:[#allocation8 + $0x20] sm:$0xff]
    %v166 = vld [vmem:[#allocation8 + $0x28] sm:$0xff]
    %v167 = vld [vmem:[#allocation8 + $0x30] sm:$0xff]
    %v168 = vld [vmem:[#allocation8 + $0x38] sm:$0xff]
    %v169 = vld [vmem:[#allocation8 + $0x40] sm:$0xff]
    %v170 = vld [vmem:[#allocation8 + $0x48] sm:$0xff]
    %v171 = vld [vmem:[#allocation8 + $0x50] sm:$0xff]
    %v172 = vld [vmem:[#allocation8 + $0x58] sm:$0xff]
    %v173 = vld [vmem:[#allocation8 + $0x60] sm:$0xff]
    %v174 = vld [vmem:[#allocation8 + $0x68] sm:$0xff]
    %v175 = vld [vmem:[#allocation8 + $0x70] sm:$0xff]
    %v176 = vld [vmem:[#allocation8 + $0x78] sm:$0xff]
    %v177 = vld [vmem:[%s4] sm:$0x1]
    %v179 = vlaneseq
    %v180 = vshrl.u32 %v179, 7
    %v181 = vsub.s32 0, %v180
    %v182 = vrot.slane %v177, %v181
    %184 = vmatprep.subr.mxu0 0.0
    %185 = vmatpush1.msra.mxu0 %v176
    %186 = vmatprep.subr.mxu0 0.0
    %187 = vmatpush1.msra.mxu0 %v175
    %188 = vmatprep.subr.mxu0 0.0
    %189 = vmatpush1.msra.mxu0 %v174
    %190 = vmatprep.subr.mxu0 0.0
    %191 = vmatpush1.msra.mxu0 %v173
    %192 = vmatprep.subr.mxu0 0.0
    %193 = vmatpush1.msra.mxu0 %v172
    %194 = vmatprep.subr.mxu0 0.0
    %195 = vmatpush1.msra.mxu0 %v171
    %196 = vmatprep.subr.mxu0 0.0
    %197 = vmatpush1.msra.mxu0 %v170
    %198 = vmatprep.subr.mxu0 0.0
    %199 = vmatpush1.msra.mxu0 %v169
    %200 = vmatprep.subr.mxu0 0.0
    %201 = vmatpush1.msra.mxu0 %v168
    %202 = vmatprep.subr.mxu0 0.0
    %203 = vmatpush1.msra.mxu0 %v167
    %204 = vmatprep.subr.mxu0 0.0
    %205 = vmatpush1.msra.mxu0 %v166
    %206 = vmatprep.subr.mxu0 0.0
    %207 = vmatpush1.msra.mxu0 %v165
    %208 = vmatprep.subr.mxu0 0.0
    %209 = vmatpush1.msra.mxu0 %v164
    %210 = vmatprep.subr.mxu0 0.0
    %211 = vmatpush1.msra.mxu0 %v163
    %212 = vmatprep.subr.mxu0 0.0
    %213 = vmatpush1.msra.mxu0 %v162
    %214 = vmatprep.subr.mxu0 0.0
    %215 = vmatpush1.msra.mxu0 %v161
    %216 = vmatprep.subr.mxu0 0.0
    %217 = vmatpush2.msra.mxu0 0.0
    %218 = vmatprep.subr.mxu0 0.0
    %219 = vmatpush2.msra.mxu0 0.0
    %220 = vmatprep.subr.mxu0 0.0
    %221 = vmatpush2.msra.mxu0 0.0
    %222 = vmatprep.subr.mxu0 0.0
    %223 = vmatpush2.msra.mxu0 0.0
    %224 = vmatprep.subr.mxu0 0.0
    %225 = vmatpush2.msra.mxu0 0.0
    %226 = vmatprep.subr.mxu0 0.0
    %227 = vmatpush2.msra.mxu0 0.0
    %228 = vmatprep.subr.mxu0 0.0
    %229 = vmatpush2.msra.mxu0 0.0
    %230 = vmatprep.subr.mxu0 0.0
    %231 = vmatpush2.msra.mxu0 0.0
    %232 = vmatprep.subr.mxu0 0.0
    %233 = vmatpush2.msra.mxu0 0.0
    %234 = vmatprep.subr.mxu0 0.0
    %235 = vmatpush2.msra.mxu0 0.0
    %236 = vmatprep.subr.mxu0 0.0
    %237 = vmatpush2.msra.mxu0 0.0
    %238 = vmatprep.subr.mxu0 0.0
    %239 = vmatpush2.msra.mxu0 0.0
    %240 = vmatprep.subr.mxu0 0.0
    %241 = vmatpush2.msra.mxu0 0.0
    %242 = vmatprep.subr.mxu0 0.0
    %243 = vmatpush2.msra.mxu0 0.0
    %244 = vmatprep.subr.mxu0 0.0
    %245 = vmatpush2.msra.mxu0 0.0
    %246 = vmatprep.subr.mxu0 0.0
    %247 = vmatpush2.msra.mxu0 0.0
    %248 = vmatprep.mubr.f32.mxu0 0.0
    %249 = vmatmul.mubr.f32.gmra.mxu0 %v160
    %v250 = vpop.f32.mrf.mxu0
    %v251 = vadd.f32 %v182, %v250
    %v252 = vpop.f32.mrf.mxu0
    %253 = vdwg.mxu0
    %254 = vst [vmem:[#allocation9] sm:$0xff] %v251
    // Predicated region
    $region38: #{tpu_custom_call.1} parent=1 // pred_check
      _
    $region39: #{tpu_custom_call.1} parent=1 // pred_check_branch
      %256 = sbr.rel (0) target = $region41
    $region40: #{tpu_custom_call.1} parent=1 // pred_region
      %s258 = ssub.s32 128, 128
      %259 = vsyncadd [#allocation5], %s258
      %s261 = sshll.u32 [#allocation9], 4
      %s262 = int_to_ptr.vmem [resolvable:$true] %s261
      %264 = dma.vmem_to_hbm [thread:$0]  %s262, 128, %s5, [#allocation5]
    $region41: #{tpu_custom_call.1} parent=1 // pred_fallthru
      _
    // Predicated region
    $region42: #{tpu_custom_call.1} parent=1 // pred_check
      _
    $region43: #{tpu_custom_call.1} parent=1 // pred_check_branch
      %266 = sbr.rel (0) target = $region45
    $region44: #{tpu_custom_call.1} parent=1 // pred_region
      %267 = dma.done [#allocation5], 128
    $region45: #{tpu_custom_call.1} parent=1 // pred_fallthru
      _
    %268 = vsyncpa [#allocation4], 1
    %269 = vsyncpa [#allocation7], 1
    %270 = vsyncpa [#allocation5], 1

// kernel: tpu_custom_call.1
$region0: #{tpu_custom_call.1}
  #allocation0 [shape = 'u32[]', space=smem, size = 0x4, offset = 0x4, fixed_abs, tag = 'smem constant byte address 0x4 - core index']
  #allocation1 [shape = 'u32[144,128]{1,0:T(1,128)}', space=vmem, size = 0x12000, scoped, tag = 'internal scratch']
  #allocation2 [shape = 'f32[8,128]{1,0:T(8,128)}', space=vmem, size = 0x1000, scoped, tag = 'scratch operand']
  %s0 = inlined_call_operand.hbm [shape: f32[8,128], index: 0, kind: input, shape index: {}]
  %s1 = inlined_call_operand.hbm [shape: f32[128,128], index: 1, kind: input, shape index: {}]
  %s2 = inlined_call_operand.vmem [shape: f32[1,128], index: 2, kind: input, shape index: {}]
  %s3 = inlined_call_operand.hbm [shape: f32[128,128], index: 3, kind: input, shape index: {}]
  %s4 = inlined_call_operand.vmem [shape: f32[1,128], index: 4, kind: input, shape index: {}]
  %s5 = inlined_call_operand.hbm [shape: f32[8,128], index: 5, kind: output, shape index: {}]
  %s6 = sld [smem:[#allocation0]]
  $region46: #{tpu_custom_call.1} parent=0
    _
  %s8 = ssub.s32 1, %s6
  %s9 = scalar_select 0, %s8, %s6
  $region1: #{tpu_custom_call.1} parent=0
    #allocation3 [shape = 'u8[4096]{0}', space=vmem, size = 0x1000, scoped, tag = 'input window, operand 0, single buffered']
    #allocation4 [shape = 's32[1]{0}', space=sflag, size = 0x4, scoped, tag = 'scoped memory for tpu_custom_call.1']
    #allocation5 [shape = 's32[1]{0}', space=sflag, size = 0x4, scoped, tag = 'scoped memory for tpu_custom_call.1']
    #allocation6 [shape = 'u8[65536]{0}', space=vmem, size = 0x10000, scoped, tag = 'input window, operand 1, single buffered']
    #allocation7 [shape = 's32[1]{0}', space=sflag, size = 0x4, scoped, tag = 'scoped memory for tpu_custom_call.1']
    #allocation8 [shape = 'u8[65536]{0}', space=vmem, size = 0x10000, scoped, tag = 'input window, operand 3, single buffered']
    #allocation9 [shape = 'u8[4096]{0}', space=vmem, size = 0x1000, scoped, tag = 'output window, operand 0, single buffered']
    %10 = vsyncpa [#allocation4], 0
    %11 = vsyncpa [#allocation7], 0
    %12 = vsyncpa [#allocation5], 0
    // Predicated region
    $region2: #{tpu_custom_call.1} parent=1 // pred_check
      _
    $region3: #{tpu_custom_call.1} parent=1 // pred_check_branch
      %14 = sbr.rel (0) target = $region5
    $region4: #{tpu_custom_call.1} parent=1 // pred_region
      %s16 = ssub.s32 128, 128
      %17 = vsyncadd [#allocation4], %s16
      %s19 = sshll.u32 [#allocation3], 4
      %s20 = int_to_ptr.vmem [resolvable:$true] %s19
      %22 = dma.hbm_to_vmem [thread:$0]  %s0, 128, %s20, [#allocation4]
    $region5: #{tpu_custom_call.1} parent=1 // pred_fallthru
      _
    // Predicated region
    $region6: #{tpu_custom_call.1} parent=1 // pred_check
      _
    $region7: #{tpu_custom_call.1} parent=1 // pred_check_branch
      %24 = sbr.rel (0) target = $region9
    $region8: #{tpu_custom_call.1} parent=1 // pred_region
      %s26 = ssub.s32 2048, 2048
      %27 = vsyncadd [#allocation7], %s26
      %s28 = sshll.u32 [#allocation6], 4
      %s29 = int_to_ptr.vmem [resolvable:$true] %s28
      %34 = dma.hbm_to_vmem [thread:$0]  %s1, 2048, %s29, [#allocation7], 128, 128, 8
    $region9: #{tpu_custom_call.1} parent=1 // pred_fallthru
      _
    // Predicated region
    $region10: #{tpu_custom_call.1} parent=1 // pred_check
      _
    $region11: #{tpu_custom_call.1} parent=1 // pred_check_branch
      %36 = sbr.rel (0) target = $region13
    $region12: #{tpu_custom_call.1} parent=1 // pred_region
      _
    $region13: #{tpu_custom_call.1} parent=1 // pred_fallthru
      _
    // Predicated region
    $region14: #{tpu_custom_call.1} parent=1 // pred_check
      _
    $region15: #{tpu_custom_call.1} parent=1 // pred_check_branch
      %38 = sbr.rel (0) target = $region17
    $region16: #{tpu_custom_call.1} parent=1 // pred_region
      %s40 = ssub.s32 2048, 2048
      %41 = vsyncadd [#allocation7], %s40
      %s42 = sshll.u32 [#allocation8], 4
      %s43 = int_to_ptr.vmem [resolvable:$true] %s42
      %48 = dma.hbm_to_vmem [thread:$0]  %s3, 2048, %s43, [#allocation7], 128, 128, 8
    $region17: #{tpu_custom_call.1} parent=1 // pred_fallthru
      _
    // Predicated region
    $region18: #{tpu_custom_call.1} parent=1 // pred_check
      _
    $region19: #{tpu_custom_call.1} parent=1 // pred_check_branch
      %50 = sbr.rel (0) target = $region21
    $region20: #{tpu_custom_call.1} parent=1 // pred_region
      _
    $region21: #{tpu_custom_call.1} parent=1 // pred_fallthru
      _
    // Predicated region
    $region22: #{tpu_custom_call.1} parent=1 // pred_check
      _
    $region23: #{tpu_custom_call.1} parent=1 // pred_check_branch
      %52 = sbr.rel (0) target = $region25
    $region24: #{tpu_custom_call.1} parent=1 // pred_region
      %53 = dma.done [#allocation4], 128
    $region25: #{tpu_custom_call.1} parent=1 // pred_fallthru
      _
    // Predicated region
    $region26: #{tpu_custom_call.1} parent=1 // pred_check
      _
    $region27: #{tpu_custom_call.1} parent=1 // pred_check_branch
      %55 = sbr.rel (0) target = $region29
    $region28: #{tpu_custom_call.1} parent=1 // pred_region
      %56 = dma.done [#allocation7], 2048
    $region29: #{tpu_custom_call.1} parent=1 // pred_fallthru
      _
    // Predicated region
    $region30: #{tpu_custom_call.1} parent=1 // pred_check
      _
    $region31: #{tpu_custom_call.1} parent=1 // pred_check_branch
      %58 = sbr.rel (0) target = $region33
    $region32: #{tpu_custom_call.1} parent=1 // pred_region
      %59 = dma.done [#allocation7], 2048
    $region33: #{tpu_custom_call.1} parent=1 // pred_fallthru
      _
    %p60 = scmp.eq.s32.totalorder 0, 0
    // Predicated region
    $region34: #{tpu_custom_call.1} parent=1 // pred_check
      %p61 = pneg %p60
    $region35: #{tpu_custom_call.1} parent=1 // pred_check_branch
      %63 = sbr.rel (%p61) target = $region37
    $region36: #{tpu_custom_call.1} parent=1 // pred_region
      %v64 = vld [vmem:[#allocation3] sm:$0xff]
      %v65 = vld [vmem:[#allocation6] sm:$0xff]
      %v66 = vld [vmem:[#allocation6 + $0x8] sm:$0xff]
      %v67 = vld [vmem:[#allocation6 + $0x10] sm:$0xff]
      %v68 = vld [vmem:[#allocation6 + $0x18] sm:$0xff]
      %v69 = vld [vmem:[#allocation6 + $0x20] sm:$0xff]
      %v70 = vld [vmem:[#allocation6 + $0x28] sm:$0xff]
      %v71 = vld [vmem:[#allocation6 + $0x30] sm:$0xff]
      %v72 = vld [vmem:[#allocation6 + $0x38] sm:$0xff]
      %v73 = vld [vmem:[#allocation6 + $0x40] sm:$0xff]
      %v74 = vld [vmem:[#allocation6 + $0x48] sm:$0xff]
      %v75 = vld [vmem:[#allocation6 + $0x50] sm:$0xff]
      %v76 = vld [vmem:[#allocation6 + $0x58] sm:$0xff]
      %v77 = vld [vmem:[#allocation6 + $0x60] sm:$0xff]
      %v78 = vld [vmem:[#allocation6 + $0x68] sm:$0xff]
      %v79 = vld [vmem:[#allocation6 + $0x70] sm:$0xff]
      %v80 = vld [vmem:[#allocation6 + $0x78] sm:$0xff]
      %v81 = vld [vmem:[%s2] sm:$0x1]
      %v83 = vlaneseq
      %v84 = vshrl.u32 %v83, 7
      %v85 = vsub.s32 0, %v84
      %v86 = vrot.slane %v81, %v85
      %88 = vmatprep.subr.mxu0 0.0
      %89 = vmatpush1.msra.mxu0 %v80
      %90 = vmatprep.subr.mxu0 0.0
      %91 = vmatpush1.msra.mxu0 %v79
      %92 = vmatprep.subr.mxu0 0.0
      %93 = vmatpush1.msra.mxu0 %v78
      %94 = vmatprep.subr.mxu0 0.0
      %95 = vmatpush1.msra.mxu0 %v77
      %96 = vmatprep.subr.mxu0 0.0
      %97 = vmatpush1.msra.mxu0 %v76
      %98 = vmatprep.subr.mxu0 0.0
      %99 = vmatpush1.msra.mxu0 %v75
      %100 = vmatprep.subr.mxu0 0.0
      %101 = vmatpush1.msra.mxu0 %v74
      %102 = vmatprep.subr.mxu0 0.0
      %103 = vmatpush1.msra.mxu0 %v73
      %104 = vmatprep.subr.mxu0 0.0
      %105 = vmatpush1.msra.mxu0 %v72
      %106 = vmatprep.subr.mxu0 0.0
      %107 = vmatpush1.msra.mxu0 %v71
      %108 = vmatprep.subr.mxu0 0.0
      %109 = vmatpush1.msra.mxu0 %v70
      %110 = vmatprep.subr.mxu0 0.0
      %111 = vmatpush1.msra.mxu0 %v69
      %112 = vmatprep.subr.mxu0 0.0
      %113 = vmatpush1.msra.mxu0 %v68
      %114 = vmatprep.subr.mxu0 0.0
      %115 = vmatpush1.msra.mxu0 %v67
      %116 = vmatprep.subr.mxu0 0.0
      %117 = vmatpush1.msra.mxu0 %v66
      %118 = vmatprep.subr.mxu0 0.0
      %119 = vmatpush1.msra.mxu0 %v65
      %120 = vmatprep.subr.mxu0 0.0
      %121 = vmatpush2.msra.mxu0 0.0
      %122 = vmatprep.subr.mxu0 0.0
      %123 = vmatpush2.msra.mxu0 0.0
      %124 = vmatprep.subr.mxu0 0.0
      %125 = vmatpush2.msra.mxu0 0.0
      %126 = vmatprep.subr.mxu0 0.0
      %127 = vmatpush2.msra.mxu0 0.0
      %128 = vmatprep.subr.mxu0 0.0
      %129 = vmatpush2.msra.mxu0 0.0
      %130 = vmatprep.subr.mxu0 0.0
      %131 = vmatpush2.msra.mxu0 0.0
      %132 = vmatprep.subr.mxu0 0.0
      %133 = vmatpush2.msra.mxu0 0.0
      %134 = vmatprep.subr.mxu0 0.0
      %135 = vmatpush2.msra.mxu0 0.0
      %136 = vmatprep.subr.mxu0 0.0
      %137 = vmatpush2.msra.mxu0 0.0
      %138 = vmatprep.subr.mxu0 0.0
      %139 = vmatpush2.msra.mxu0 0.0
      %140 = vmatprep.subr.mxu0 0.0
      %141 = vmatpush2.msra.mxu0 0.0
      %142 = vmatprep.subr.mxu0 0.0
      %143 = vmatpush2.msra.mxu0 0.0
      %144 = vmatprep.subr.mxu0 0.0
      %145 = vmatpush2.msra.mxu0 0.0
      %146 = vmatprep.subr.mxu0 0.0
      %147 = vmatpush2.msra.mxu0 0.0
      %148 = vmatprep.subr.mxu0 0.0
      %149 = vmatpush2.msra.mxu0 0.0
      %150 = vmatprep.subr.mxu0 0.0
      %151 = vmatpush2.msra.mxu0 0.0
      %152 = vmatprep.mubr.f32.mxu0 0.0
      %153 = vmatmul.mubr.f32.gmra.mxu0 %v64
      %v154 = vpop.f32.mrf.mxu0
      %v155 = vadd.f32 %v86, %v154
      %v156 = vpop.f32.mrf.mxu0
      %157 = vdwg.mxu0
      %v158 = vmax.f32 %v155, 0.0
      %159 = vst [vmem:[#allocation2] sm:$0xff] %v158
    $region37: #{tpu_custom_call.1} parent=1 // pred_fallthru
      _
    %v160 = vld [vmem:[#allocation2] sm:$0xff]
    %v161 = vld [vmem:[#allocation8] sm:$0xff]
    %v162 = vld [vmem:[#allocation8 + $0x8] sm:$0xff]
    %v163 = vld [vmem:[#allocation8 + $0x10] sm:$0xff]
    %v164 = vld [vmem:[#allocation8 + $0x18] sm:$0xff]
    %v165 = vld [vmem:[#allocation8 + $0x20] sm:$0xff]
    %v166 = vld [vmem:[#allocation8 + $0x28] sm:$0xff]
    %v167 = vld [vmem:[#allocation8 + $0x30] sm:$0xff]
    %v168 = vld [vmem:[#allocation8 + $0x38] sm:$0xff]
    %v169 = vld [vmem:[#allocation8 + $0x40] sm:$0xff]
    %v170 = vld [vmem:[#allocation8 + $0x48] sm:$0xff]
    %v171 = vld [vmem:[#allocation8 + $0x50] sm:$0xff]
    %v172 = vld [vmem:[#allocation8 + $0x58] sm:$0xff]
    %v173 = vld [vmem:[#allocation8 + $0x60] sm:$0xff]
    %v174 = vld [vmem:[#allocation8 + $0x68] sm:$0xff]
    %v175 = vld [vmem:[#allocation8 + $0x70] sm:$0xff]
    %v176 = vld [vmem:[#allocation8 + $0x78] sm:$0xff]
    %v177 = vld [vmem:[%s4] sm:$0x1]
    %v179 = vlaneseq
    %v180 = vshrl.u32 %v179, 7
    %v181 = vsub.s32 0, %v180
    %v182 = vrot.slane %v177, %v181
    %184 = vmatprep.subr.mxu0 0.0
    %185 = vmatpush1.msra.mxu0 %v176
    %186 = vmatprep.subr.mxu0 0.0
    %187 = vmatpush1.msra.mxu0 %v175
    %188 = vmatprep.subr.mxu0 0.0
    %189 = vmatpush1.msra.mxu0 %v174
    %190 = vmatprep.subr.mxu0 0.0
    %191 = vmatpush1.msra.mxu0 %v173
    %192 = vmatprep.subr.mxu0 0.0
    %193 = vmatpush1.msra.mxu0 %v172
    %194 = vmatprep.subr.mxu0 0.0
    %195 = vmatpush1.msra.mxu0 %v171
    %196 = vmatprep.subr.mxu0 0.0
    %197 = vmatpush1.msra.mxu0 %v170
    %198 = vmatprep.subr.mxu0 0.0
    %199 = vmatpush1.msra.mxu0 %v169
    %200 = vmatprep.subr.mxu0 0.0
    %201 = vmatpush1.msra.mxu0 %v168
    %202 = vmatprep.subr.mxu0 0.0
    %203 = vmatpush1.msra.mxu0 %v167
    %204 = vmatprep.subr.mxu0 0.0
    %205 = vmatpush1.msra.mxu0 %v166
    %206 = vmatprep.subr.mxu0 0.0
    %207 = vmatpush1.msra.mxu0 %v165
    %208 = vmatprep.subr.mxu0 0.0
    %209 = vmatpush1.msra.mxu0 %v164
    %210 = vmatprep.subr.mxu0 0.0
    %211 = vmatpush1.msra.mxu0 %v163
    %212 = vmatprep.subr.mxu0 0.0
    %213 = vmatpush1.msra.mxu0 %v162
    %214 = vmatprep.subr.mxu0 0.0
    %215 = vmatpush1.msra.mxu0 %v161
    %216 = vmatprep.subr.mxu0 0.0
    %217 = vmatpush2.msra.mxu0 0.0
    %218 = vmatprep.subr.mxu0 0.0
    %219 = vmatpush2.msra.mxu0 0.0
    %220 = vmatprep.subr.mxu0 0.0
    %221 = vmatpush2.msra.mxu0 0.0
    %222 = vmatprep.subr.mxu0 0.0
    %223 = vmatpush2.msra.mxu0 0.0
    %224 = vmatprep.subr.mxu0 0.0
    %225 = vmatpush2.msra.mxu0 0.0
    %226 = vmatprep.subr.mxu0 0.0
    %227 = vmatpush2.msra.mxu0 0.0
    %228 = vmatprep.subr.mxu0 0.0
    %229 = vmatpush2.msra.mxu0 0.0
    %230 = vmatprep.subr.mxu0 0.0
    %231 = vmatpush2.msra.mxu0 0.0
    %232 = vmatprep.subr.mxu0 0.0
    %233 = vmatpush2.msra.mxu0 0.0
    %234 = vmatprep.subr.mxu0 0.0
    %235 = vmatpush2.msra.mxu0 0.0
    %236 = vmatprep.subr.mxu0 0.0
    %237 = vmatpush2.msra.mxu0 0.0
    %238 = vmatprep.subr.mxu0 0.0
    %239 = vmatpush2.msra.mxu0 0.0
    %240 = vmatprep.subr.mxu0 0.0
    %241 = vmatpush2.msra.mxu0 0.0
    %242 = vmatprep.subr.mxu0 0.0
    %243 = vmatpush2.msra.mxu0 0.0
    %244 = vmatprep.subr.mxu0 0.0
    %245 = vmatpush2.msra.mxu0 0.0
    %246 = vmatprep.subr.mxu0 0.0
    %247 = vmatpush2.msra.mxu0 0.0
    %248 = vmatprep.mubr.f32.mxu0 0.0
    %249 = vmatmul.mubr.f32.gmra.mxu0 %v160
    %v250 = vpop.f32.mrf.mxu0
    %v251 = vadd.f32 %v182, %v250
    %v252 = vpop.f32.mrf.mxu0
    %253 = vdwg.mxu0
    %254 = vst [vmem:[#allocation9] sm:$0xff] %v251
    // Predicated region
    $region38: #{tpu_custom_call.1} parent=1 // pred_check
      _
    $region39: #{tpu_custom_call.1} parent=1 // pred_check_branch
      %256 = sbr.rel (0) target = $region41
    $region40: #{tpu_custom_call.1} parent=1 // pred_region
      %s258 = ssub.s32 128, 128
      %259 = vsyncadd [#allocation5], %s258
      %s261 = sshll.u32 [#allocation9], 4
      %s262 = int_to_ptr.vmem [resolvable:$true] %s261
      %264 = dma.vmem_to_hbm [thread:$0]  %s262, 128, %s5, [#allocation5]
    $region41: #{tpu_custom_call.1} parent=1 // pred_fallthru
      _
    // Predicated region
    $region42: #{tpu_custom_call.1} parent=1 // pred_check
      _
    $region43: #{tpu_custom_call.1} parent=1 // pred_check_branch
      %266 = sbr.rel (0) target = $region45
    $region44: #{tpu_custom_call.1} parent=1 // pred_region
      %267 = dma.done [#allocation5], 128
    $region45: #{tpu_custom_call.1} parent=1 // pred_fallthru
      _
    %268 = vsyncpa [#allocation4], 1
    %269 = vsyncpa [#allocation7], 1
    %270 = vsyncpa [#allocation5], 1

</llo_original>
